<compile_context>
chip_gen: v7x
topology: tpu7x:2x2x1
jax: 0.10.0
libtpu: 0.0.40
codegen_flags: <defaults>
</compile_context>

<pallas_src>
import functools
import math

import jax
import jax.numpy as jnp
from jax.experimental import pallas as pl
from jax.experimental.pallas import tpu as pltpu

_LANES = 1024          # lane-dense last dim: long unmasked vld/vst bursts
_MAX_TILE_ROWS = 512   # 512 * 1024 * 4 B = 2 MiB per f32 buffer per pipeline slot


def _fmix32(x):
    """murmur3 32-bit finalizer: full-avalanche integer mix (pure VPU ops)."""
    x = x ^ (x >> 16)
    x = x * jnp.uint32(0x85EBCA6B)
    x = x ^ (x >> 13)
    x = x * jnp.uint32(0xC2B2AE35)
    x = x ^ (x >> 16)
    return x


def _inject_noise_kernel(seed_ref, x_ref, o_ref, *, mean, stddev):
    tile_rows, lanes = x_ref.shape
    hl = lanes // 2  # each (u1, u2) pair feeds two normals -> split lanes in half

    # Globally unique per-pair counters (distinct across grid tiles via
    # program_id) so the tiled grid never replays the same noise block.
    pid = pl.program_id(0)
    row = jax.lax.broadcasted_iota(jnp.int32, (tile_rows, hl), 0).astype(jnp.uint32)
    col = jax.lax.broadcasted_iota(jnp.int32, (tile_rows, hl), 1).astype(jnp.uint32)
    global_row = (pid * tile_rows).astype(jnp.uint32) + row
    pair_idx = global_row * jnp.uint32(hl) + col

    key = _fmix32(seed_ref[0].astype(jnp.uint32) + jnp.uint32(0x9E3779B9))
    h1 = _fmix32(_fmix32(pair_idx * jnp.uint32(2) + key))
    h2 = _fmix32(_fmix32(pair_idx * jnp.uint32(2) + jnp.uint32(1) + key))

    # Top 24 bits -> uniforms in (0, 1); never exactly 0, so log() is safe.
    inv24 = jnp.float32(1.0 / (1 << 24))
    u1 = ((h1 >> 8).astype(jnp.int32).astype(jnp.float32) + jnp.float32(0.5)) * inv24
    u2 = ((h2 >> 8).astype(jnp.int32).astype(jnp.float32) + jnp.float32(0.5)) * inv24

    # Box-Muller, using both outputs of each (u1, u2) pair.
    r = jnp.sqrt(jnp.float32(-2.0) * jnp.log(u1))
    theta = jnp.float32(2.0 * math.pi) * u2
    scale = jnp.float32(stddev)
    shift = jnp.float32(mean)
    n0 = (shift + scale * (r * jnp.cos(theta))).astype(o_ref.dtype)
    n1 = (shift + scale * (r * jnp.sin(theta))).astype(o_ref.dtype)

    # Two 512-lane-aligned stores (no masked partial stores).
    o_ref[:, :hl] = x_ref[:, :hl] + n0
    o_ref[:, hl:] = x_ref[:, hl:] + n1


def inject_noise(x, *, noise_mean=0.0, noise_stddev=0.1, seed=0):
    """Pallas implementation of inject_noise.forward (dropout disabled)."""
    # TODO(synk): optional nn.Dropout branch (ctor dropout=True) not implemented;
    # the module's default is an identity Sequential.
    if noise_stddev == 0:
        return x  # matches the PyTorch early-out when stddev == 0

    orig_shape = x.shape
    n = x.size
    # Pad the flat view to a multiple of 8 * _LANES so the slab has clean
    # (8, 128) sublane tiling; the pad tail is sliced off afterwards.
    chunk = 8 * _LANES
    n_pad = ((n + chunk - 1) // chunk) * chunk
    flat = x.reshape(-1)
    if n_pad != n:
        flat = jnp.pad(flat, (0, n_pad - n))
    rows = n_pad // _LANES
    x2d = flat.reshape(rows, _LANES)

    tile_rows = min(_MAX_TILE_ROWS, rows)   # rows is a multiple of 8
    grid = pl.cdiv(rows, tile_rows)

    kernel = functools.partial(
        _inject_noise_kernel, mean=float(noise_mean), stddev=float(noise_stddev)
    )

    out2d = pl.pallas_call(
        kernel,
        out_shape=jax.ShapeDtypeStruct((rows, _LANES), x.dtype),
        grid_spec=pltpu.PrefetchScalarGridSpec(
            num_scalar_prefetch=1,
            grid=(grid,),
            in_specs=[pl.BlockSpec((tile_rows, _LANES), lambda i, seed_ref: (i, 0))],
            out_specs=pl.BlockSpec((tile_rows, _LANES), lambda i, seed_ref: (i, 0)),
        ),
        compiler_params=pltpu.CompilerParams(
            dimension_semantics=("parallel",),  # shards tiles across v7x's 2 TCs
        ),
        cost_estimate=pl.CostEstimate(
            flops=16 * n_pad,
            transcendentals=2 * n_pad,
            bytes_accessed=2 * n_pad * x.dtype.itemsize,
        ),
    )(jnp.array([seed], dtype=jnp.int32), x2d)

    out_flat = out2d.reshape(-1)
    if n_pad != n:
        out_flat = out_flat[:n]
    return out_flat.reshape(orig_shape)


if __name__ == "__main__":
    key = jax.random.PRNGKey(0)
    # NCHW input, small shapes consistent with a GAN discriminator feature map.
    x = jax.random.normal(key, (2, 4, 16, 16), dtype=jnp.float32)

    out = inject_noise(x, noise_mean=0.0, noise_stddev=0.1, seed=42)
    out = jax.block_until_ready(out)

    # Light sanity checks: shape/dtype preserved, perturbation magnitude sane.
    assert out.shape == x.shape and out.dtype == x.dtype
    diff = out - x
    assert float(jnp.std(diff)) > 0.0            # noise actually injected
    assert float(jnp.max(jnp.abs(diff))) < 1.0   # ~N(0, 0.1) noise added

    print("KERNEL_OK")
</pallas_src>

<mosaic_0001>
module attributes {stable_mosaic.version = 11 : i64} {
  func.func @_inject_noise_kernel(%arg0: i32, %arg1: memref<1xi32, #tpu.memory_space<smem>>, %arg2: memref<8x1024xf32, #tpu.memory_space<vmem>>, %arg3: memref<8x1024xf32, #tpu.memory_space<vmem>>) attributes {dimension_semantics = [#tpu.dimension_semantics<parallel>], iteration_bounds = array<i64: 1>, scalar_prefetch = 1 : i64, scratch_operands = 0 : i64, tpu.core_type = #tpu.core_type<tc>, window_params = [{transform_indices = @transform_0, window_bounds = array<i64: 8, 1024>}, {transform_indices = @transform_1, window_bounds = array<i64: 8, 1024>}]} {
    %0 = tpu.iota {dimensions = array<i32: 0>} : vector<8x512xi32>
    %1 = tpu.iota {dimensions = array<i32: 1>} : vector<8x512xi32>
    %c8_i32 = arith.constant 8 : i32
    %2 = arith.muli %arg0, %c8_i32 : i32
    %3 = vector.broadcast %2 : i32 to vector<8x512xi32>
    %4 = arith.addi %3, %0 : vector<8x512xi32>
    %c512_i32 = arith.constant 512 : i32
    %5 = vector.broadcast %c512_i32 : i32 to vector<8x512xi32>
    %6 = arith.muli %4, %5 : vector<8x512xi32>
    %7 = arith.addi %6, %1 : vector<8x512xi32>
    %c0 = arith.constant 0 : index
    %8 = memref.load %arg1[%c0] : memref<1xi32, #tpu.memory_space<smem>>
    %c-1640531527_i32 = arith.constant -1640531527 : i32
    %9 = arith.addi %8, %c-1640531527_i32 : i32
    %c16_i32 = arith.constant 16 : i32
    %10 = arith.shrui %9, %c16_i32 : i32
    %11 = arith.xori %9, %10 : i32
    %c-2048144789_i32 = arith.constant -2048144789 : i32
    %12 = arith.muli %11, %c-2048144789_i32 : i32
    %c13_i32 = arith.constant 13 : i32
    %13 = arith.shrui %12, %c13_i32 : i32
    %14 = arith.xori %12, %13 : i32
    %c-1028477387_i32 = arith.constant -1028477387 : i32
    %15 = arith.muli %14, %c-1028477387_i32 : i32
    %c16_i32_0 = arith.constant 16 : i32
    %16 = arith.shrui %15, %c16_i32_0 : i32
    %17 = arith.xori %15, %16 : i32
    %c2_i32 = arith.constant 2 : i32
    %18 = vector.broadcast %c2_i32 : i32 to vector<8x512xi32>
    %19 = arith.muli %7, %18 : vector<8x512xi32>
    %20 = vector.broadcast %17 : i32 to vector<8x512xi32>
    %21 = arith.addi %19, %20 : vector<8x512xi32>
    %c16_i32_1 = arith.constant 16 : i32
    %22 = vector.broadcast %c16_i32_1 : i32 to vector<8x512xi32>
    %23 = arith.shrui %21, %22 : vector<8x512xi32>
    %24 = arith.xori %21, %23 : vector<8x512xi32>
    %c-2048144789_i32_2 = arith.constant -2048144789 : i32
    %25 = vector.broadcast %c-2048144789_i32_2 : i32 to vector<8x512xi32>
    %26 = arith.muli %24, %25 : vector<8x512xi32>
    %c13_i32_3 = arith.constant 13 : i32
    %27 = vector.broadcast %c13_i32_3 : i32 to vector<8x512xi32>
    %28 = arith.shrui %26, %27 : vector<8x512xi32>
    %29 = arith.xori %26, %28 : vector<8x512xi32>
    %c-1028477387_i32_4 = arith.constant -1028477387 : i32
    %30 = vector.broadcast %c-1028477387_i32_4 : i32 to vector<8x512xi32>
    %31 = arith.muli %29, %30 : vector<8x512xi32>
    %c16_i32_5 = arith.constant 16 : i32
    %32 = vector.broadcast %c16_i32_5 : i32 to vector<8x512xi32>
    %33 = arith.shrui %31, %32 : vector<8x512xi32>
    %34 = arith.xori %31, %33 : vector<8x512xi32>
    %c16_i32_6 = arith.constant 16 : i32
    %35 = vector.broadcast %c16_i32_6 : i32 to vector<8x512xi32>
    %36 = arith.shrui %34, %35 : vector<8x512xi32>
    %37 = arith.xori %34, %36 : vector<8x512xi32>
    %c-2048144789_i32_7 = arith.constant -2048144789 : i32
    %38 = vector.broadcast %c-2048144789_i32_7 : i32 to vector<8x512xi32>
    %39 = arith.muli %37, %38 : vector<8x512xi32>
    %c13_i32_8 = arith.constant 13 : i32
    %40 = vector.broadcast %c13_i32_8 : i32 to vector<8x512xi32>
    %41 = arith.shrui %39, %40 : vector<8x512xi32>
    %42 = arith.xori %39, %41 : vector<8x512xi32>
    %c-1028477387_i32_9 = arith.constant -1028477387 : i32
    %43 = vector.broadcast %c-1028477387_i32_9 : i32 to vector<8x512xi32>
    %44 = arith.muli %42, %43 : vector<8x512xi32>
    %c16_i32_10 = arith.constant 16 : i32
    %45 = vector.broadcast %c16_i32_10 : i32 to vector<8x512xi32>
    %46 = arith.shrui %44, %45 : vector<8x512xi32>
    %47 = arith.xori %44, %46 : vector<8x512xi32>
    %c2_i32_11 = arith.constant 2 : i32
    %48 = vector.broadcast %c2_i32_11 : i32 to vector<8x512xi32>
    %49 = arith.muli %7, %48 : vector<8x512xi32>
    %c1_i32 = arith.constant 1 : i32
    %50 = vector.broadcast %c1_i32 : i32 to vector<8x512xi32>
    %51 = arith.addi %49, %50 : vector<8x512xi32>
    %52 = vector.broadcast %17 : i32 to vector<8x512xi32>
    %53 = arith.addi %51, %52 : vector<8x512xi32>
    %c16_i32_12 = arith.constant 16 : i32
    %54 = vector.broadcast %c16_i32_12 : i32 to vector<8x512xi32>
    %55 = arith.shrui %53, %54 : vector<8x512xi32>
    %56 = arith.xori %53, %55 : vector<8x512xi32>
    %c-2048144789_i32_13 = arith.constant -2048144789 : i32
    %57 = vector.broadcast %c-2048144789_i32_13 : i32 to vector<8x512xi32>
    %58 = arith.muli %56, %57 : vector<8x512xi32>
    %c13_i32_14 = arith.constant 13 : i32
    %59 = vector.broadcast %c13_i32_14 : i32 to vector<8x512xi32>
    %60 = arith.shrui %58, %59 : vector<8x512xi32>
    %61 = arith.xori %58, %60 : vector<8x512xi32>
    %c-1028477387_i32_15 = arith.constant -1028477387 : i32
    %62 = vector.broadcast %c-1028477387_i32_15 : i32 to vector<8x512xi32>
    %63 = arith.muli %61, %62 : vector<8x512xi32>
    %c16_i32_16 = arith.constant 16 : i32
    %64 = vector.broadcast %c16_i32_16 : i32 to vector<8x512xi32>
    %65 = arith.shrui %63, %64 : vector<8x512xi32>
    %66 = arith.xori %63, %65 : vector<8x512xi32>
    %c16_i32_17 = arith.constant 16 : i32
    %67 = vector.broadcast %c16_i32_17 : i32 to vector<8x512xi32>
    %68 = arith.shrui %66, %67 : vector<8x512xi32>
    %69 = arith.xori %66, %68 : vector<8x512xi32>
    %c-2048144789_i32_18 = arith.constant -2048144789 : i32
    %70 = vector.broadcast %c-2048144789_i32_18 : i32 to vector<8x512xi32>
    %71 = arith.muli %69, %70 : vector<8x512xi32>
    %c13_i32_19 = arith.constant 13 : i32
    %72 = vector.broadcast %c13_i32_19 : i32 to vector<8x512xi32>
    %73 = arith.shrui %71, %72 : vector<8x512xi32>
    %74 = arith.xori %71, %73 : vector<8x512xi32>
    %c-1028477387_i32_20 = arith.constant -1028477387 : i32
    %75 = vector.broadcast %c-1028477387_i32_20 : i32 to vector<8x512xi32>
    %76 = arith.muli %74, %75 : vector<8x512xi32>
    %c16_i32_21 = arith.constant 16 : i32
    %77 = vector.broadcast %c16_i32_21 : i32 to vector<8x512xi32>
    %78 = arith.shrui %76, %77 : vector<8x512xi32>
    %79 = arith.xori %76, %78 : vector<8x512xi32>
    %c8_i32_22 = arith.constant 8 : i32
    %80 = vector.broadcast %c8_i32_22 : i32 to vector<8x512xi32>
    %81 = arith.shrui %47, %80 : vector<8x512xi32>
    %82 = arith.sitofp %81 : vector<8x512xi32> to vector<8x512xf32>
    %cst = arith.constant 5.000000e-01 : f32
    %83 = vector.broadcast %cst : f32 to vector<8x512xf32>
    %84 = arith.addf %82, %83 : vector<8x512xf32>
    %cst_23 = arith.constant 5.96046448E-8 : f32
    %85 = vector.broadcast %cst_23 : f32 to vector<8x512xf32>
    %86 = arith.mulf %84, %85 : vector<8x512xf32>
    %c8_i32_24 = arith.constant 8 : i32
    %87 = vector.broadcast %c8_i32_24 : i32 to vector<8x512xi32>
    %88 = arith.shrui %79, %87 : vector<8x512xi32>
    %89 = arith.sitofp %88 : vector<8x512xi32> to vector<8x512xf32>
    %cst_25 = arith.constant 5.000000e-01 : f32
    %90 = vector.broadcast %cst_25 : f32 to vector<8x512xf32>
    %91 = arith.addf %89, %90 : vector<8x512xf32>
    %cst_26 = arith.constant 5.96046448E-8 : f32
    %92 = vector.broadcast %cst_26 : f32 to vector<8x512xf32>
    %93 = arith.mulf %91, %92 : vector<8x512xf32>
    %94 = math.log %86 : vector<8x512xf32>
    %cst_27 = arith.constant -2.000000e+00 : f32
    %95 = vector.broadcast %cst_27 : f32 to vector<8x512xf32>
    %96 = arith.mulf %95, %94 : vector<8x512xf32>
    %97 = math.sqrt %96 : vector<8x512xf32>
    %cst_28 = arith.constant 6.28318548 : f32
    %98 = vector.broadcast %cst_28 : f32 to vector<8x512xf32>
    %99 = arith.mulf %98, %93 : vector<8x512xf32>
    %100 = math.cos %99 : vector<8x512xf32>
    %101 = arith.mulf %97, %100 : vector<8x512xf32>
    %cst_29 = arith.constant 1.000000e-01 : f32
    %102 = vector.broadcast %cst_29 : f32 to vector<8x512xf32>
    %103 = arith.mulf %102, %101 : vector<8x512xf32>
    %cst_30 = arith.constant 0.000000e+00 : f32
    %104 = vector.broadcast %cst_30 : f32 to vector<8x512xf32>
    %105 = arith.addf %104, %103 : vector<8x512xf32>
    %106 = math.sin %99 : vector<8x512xf32>
    %107 = arith.mulf %97, %106 : vector<8x512xf32>
    %cst_31 = arith.constant 1.000000e-01 : f32
    %108 = vector.broadcast %cst_31 : f32 to vector<8x512xf32>
    %109 = arith.mulf %108, %107 : vector<8x512xf32>
    %cst_32 = arith.constant 0.000000e+00 : f32
    %110 = vector.broadcast %cst_32 : f32 to vector<8x512xf32>
    %111 = arith.addf %110, %109 : vector<8x512xf32>
    %c0_33 = arith.constant 0 : index
    %c0_34 = arith.constant 0 : index
    %112 = vector.load %arg2[%c0_33, %c0_34] : memref<8x1024xf32, #tpu.memory_space<vmem>>, vector<8x512xf32>
    %113 = arith.addf %112, %105 : vector<8x512xf32>
    %c0_35 = arith.constant 0 : index
    %c0_36 = arith.constant 0 : index
    %114 = vector.load %arg3[%c0_35, %c0_36] : memref<8x1024xf32, #tpu.memory_space<vmem>>, vector<8x512xf32>
    tpu.vector_store %arg3[%c0_35, %c0_36], %113 {strides = array<i32>} : memref<8x1024xf32, #tpu.memory_space<vmem>>, vector<8x512xf32>,
    %c0_37 = arith.constant 0 : index
    %c512 = arith.constant 512 : index
    %115 = vector.load %arg2[%c0_37, %c512] : memref<8x1024xf32, #tpu.memory_space<vmem>>, vector<8x512xf32>
    %116 = arith.addf %115, %111 : vector<8x512xf32>
    %c0_38 = arith.constant 0 : index
    %c512_39 = arith.constant 512 : index
    %117 = vector.load %arg3[%c0_38, %c512_39] : memref<8x1024xf32, #tpu.memory_space<vmem>>, vector<8x512xf32>
    tpu.vector_store %arg3[%c0_38, %c512_39], %116 {strides = array<i32>} : memref<8x1024xf32, #tpu.memory_space<vmem>>, vector<8x512xf32>,
    return
  }
  func.func @transform_0(%arg0: i32, %arg1: memref<1xi32, #tpu.memory_space<smem>>) -> (i32, i32) {
    %c0_i32 = arith.constant 0 : i32
    %c0_i32_0 = arith.constant 0 : i32
    return %arg0, %c0_i32 : i32, i32
  }
  func.func @transform_1(%arg0: i32, %arg1: memref<1xi32, #tpu.memory_space<smem>>) -> (i32, i32) {
    %c0_i32 = arith.constant 0 : i32
    %c0_i32_0 = arith.constant 0 : i32
    return %arg0, %c0_i32 : i32, i32
  }
}

</mosaic_0001>

<llo_original>
// kernel: tpu_custom_call.1
$region0: #{tpu_custom_call.1}
  #allocation0 [shape = 'u32[]', space=smem, size = 0x4, offset = 0x4, fixed_abs, tag = 'smem constant byte address 0x4 - core index']
  #allocation1 [shape = 'u32[144,128]{1,0:T(1,128)}', space=vmem, size = 0x12000, scoped, tag = 'internal scratch']
  #allocation2 [shape = 's32[1]{0}', space=sflag, size = 0x4, scoped, tag = 'scoped memory for tpu_custom_call.1']
  #allocation3 [shape = 's32[1]{0:T(128)S(6)}', space=smem, size = 0x200, scoped, tag = 'prefetched SMEM operand 0']
  %s0 = inlined_call_operand.<no memory space> [shape: s32[1], index: 0, kind: input, shape index: {}]
  %s1 = inlined_call_operand.hbm [shape: f32[8,1024], index: 1, kind: input, shape index: {}]
  %s2 = inlined_call_operand.hbm [shape: f32[8,1024], index: 2, kind: output, shape index: {}]
  %s3 = sld [smem:[#allocation0]]
  $region18: #{tpu_custom_call.1} parent=0
    _
  %s5 = ssub.s32 1, %s3
  %s6 = scalar_select 0, %s5, %s3
  %7 = sst [smem:[#allocation3]] %s0
  $region1: #{tpu_custom_call.1} parent=0
    #allocation4 [shape = 'u8[32768]{0}', space=vmem, size = 0x8000, scoped, tag = 'input window, operand 1, single buffered']
    #allocation5 [shape = 's32[1]{0}', space=sflag, size = 0x4, scoped, tag = 'scoped memory for tpu_custom_call.1']
    #allocation6 [shape = 's32[1]{0}', space=sflag, size = 0x4, scoped, tag = 'scoped memory for tpu_custom_call.1']
    #allocation7 [shape = 'u8[32768]{0}', space=vmem, size = 0x8000, scoped, tag = 'output window, operand 0, single buffered']
    %8 = vsyncpa [#allocation5], 0
    %9 = vsyncpa [#allocation6], 0
    // Predicated region
    $region2: #{tpu_custom_call.1} parent=1 // pred_check
      _
    $region3: #{tpu_custom_call.1} parent=1 // pred_check_branch
      %11 = sbr.rel (0) target = $region5
    $region4: #{tpu_custom_call.1} parent=1 // pred_region
      %s13 = ssub.s32 1024, 1024
      %14 = vsyncadd [#allocation5], %s13
      %s16 = sshll.u32 [#allocation4], 4
      %s17 = int_to_ptr.vmem [resolvable:$true] %s16
      %19 = dma.hbm_to_vmem [thread:$0]  %s1, 1024, %s17, [#allocation5]
    $region5: #{tpu_custom_call.1} parent=1 // pred_fallthru
      _
    // Predicated region
    $region6: #{tpu_custom_call.1} parent=1 // pred_check
      _
    $region7: #{tpu_custom_call.1} parent=1 // pred_check_branch
      %21 = sbr.rel (0) target = $region9
    $region8: #{tpu_custom_call.1} parent=1 // pred_region
      %22 = dma.done [#allocation5], 1024
    $region9: #{tpu_custom_call.1} parent=1 // pred_fallthru
      _
    %v23 = vlaneseq
    %v24 = vshrl.u32 %v23, 7
    %v25 = vlaneseq
    %v26 = vand.u32 %v25, 127
    %v27 = vadd.s32 %v26, 128
    %v28 = vadd.s32 %v26, 256
    %v29 = vadd.s32 %v26, 384
    %s30 = smul.u32 0, 8
    %v31 = vstv %s30
    %v32 = vadd.s32 %v31, %v24
    %v33 = vmul.u32 %v32, 512
    %v34 = vadd.s32 %v33, %v26
    %v35 = vadd.s32 %v33, %v27
    %v36 = vadd.s32 %v33, %v28
    %v37 = vadd.s32 %v33, %v29
    %s38 = sld [smem:[#allocation3]]
    %s39 = sadd.s32 %s38, 2654435769
    %s40 = sshrl.u32 %s39, 16
    %s41 = sxor.u32 %s39, %s40
    %s42 = smul.u32 %s41, 2246822507
    %s43 = sshrl.u32 %s42, 13
    %s44 = sxor.u32 %s42, %s43
    %s45 = smul.u32 %s44, 3266489909
    %s46 = sshrl.u32 %s45, 16
    %s47 = sxor.u32 %s45, %s46
    %v48 = vmul.u32 %v34, 2
    %v49 = vmul.u32 %v35, 2
    %v50 = vmul.u32 %v36, 2
    %v51 = vmul.u32 %v37, 2
    %v52 = vstv %s47
    %v53 = vadd.s32 %v48, %v52
    %v54 = vadd.s32 %v49, %v52
    %v55 = vadd.s32 %v50, %v52
    %v56 = vadd.s32 %v51, %v52
    %v57 = vshrl.u32 %v53, 16
    %v58 = vshrl.u32 %v54, 16
    %v59 = vshrl.u32 %v55, 16
    %v60 = vshrl.u32 %v56, 16
    %v61 = vxor.u32 %v53, %v57
    %v62 = vxor.u32 %v54, %v58
    %v63 = vxor.u32 %v55, %v59
    %v64 = vxor.u32 %v56, %v60
    %v65 = vmul.u32 %v61, 2246822507
    %v66 = vmul.u32 %v62, 2246822507
    %v67 = vmul.u32 %v63, 2246822507
    %v68 = vmul.u32 %v64, 2246822507
    %v69 = vshrl.u32 %v65, 13
    %v70 = vshrl.u32 %v66, 13
    %v71 = vshrl.u32 %v67, 13
    %v72 = vshrl.u32 %v68, 13
    %v73 = vxor.u32 %v65, %v69
    %v74 = vxor.u32 %v66, %v70
    %v75 = vxor.u32 %v67, %v71
    %v76 = vxor.u32 %v68, %v72
    %v77 = vmul.u32 %v73, 3266489909
    %v78 = vmul.u32 %v74, 3266489909
    %v79 = vmul.u32 %v75, 3266489909
    %v80 = vmul.u32 %v76, 3266489909
    %v81 = vshrl.u32 %v77, 16
    %v82 = vshrl.u32 %v78, 16
    %v83 = vshrl.u32 %v79, 16
    %v84 = vshrl.u32 %v80, 16
    %v85 = vxor.u32 %v77, %v81
    %v86 = vxor.u32 %v78, %v82
    %v87 = vxor.u32 %v79, %v83
    %v88 = vxor.u32 %v80, %v84
    %v89 = vshrl.u32 %v85, 16
    %v90 = vshrl.u32 %v86, 16
    %v91 = vshrl.u32 %v87, 16
    %v92 = vshrl.u32 %v88, 16
    %v93 = vxor.u32 %v85, %v89
    %v94 = vxor.u32 %v86, %v90
    %v95 = vxor.u32 %v87, %v91
    %v96 = vxor.u32 %v88, %v92
    %v97 = vmul.u32 %v93, 2246822507
    %v98 = vmul.u32 %v94, 2246822507
    %v99 = vmul.u32 %v95, 2246822507
    %v100 = vmul.u32 %v96, 2246822507
    %v101 = vshrl.u32 %v97, 13
    %v102 = vshrl.u32 %v98, 13
    %v103 = vshrl.u32 %v99, 13
    %v104 = vshrl.u32 %v100, 13
    %v105 = vxor.u32 %v97, %v101
    %v106 = vxor.u32 %v98, %v102
    %v107 = vxor.u32 %v99, %v103
    %v108 = vxor.u32 %v100, %v104
    %v109 = vmul.u32 %v105, 3266489909
    %v110 = vmul.u32 %v106, 3266489909
    %v111 = vmul.u32 %v107, 3266489909
    %v112 = vmul.u32 %v108, 3266489909
    %v113 = vshrl.u32 %v109, 16
    %v114 = vshrl.u32 %v110, 16
    %v115 = vshrl.u32 %v111, 16
    %v116 = vshrl.u32 %v112, 16
    %v117 = vxor.u32 %v109, %v113
    %v118 = vxor.u32 %v110, %v114
    %v119 = vxor.u32 %v111, %v115
    %v120 = vxor.u32 %v112, %v116
    %v121 = vadd.s32 %v48, 1
    %v122 = vadd.s32 %v49, 1
    %v123 = vadd.s32 %v50, 1
    %v124 = vadd.s32 %v51, 1
    %v125 = vadd.s32 %v121, %v52
    %v126 = vadd.s32 %v122, %v52
    %v127 = vadd.s32 %v123, %v52
    %v128 = vadd.s32 %v124, %v52
    %v129 = vshrl.u32 %v125, 16
    %v130 = vshrl.u32 %v126, 16
    %v131 = vshrl.u32 %v127, 16
    %v132 = vshrl.u32 %v128, 16
    %v133 = vxor.u32 %v125, %v129
    %v134 = vxor.u32 %v126, %v130
    %v135 = vxor.u32 %v127, %v131
    %v136 = vxor.u32 %v128, %v132
    %v137 = vmul.u32 %v133, 2246822507
    %v138 = vmul.u32 %v134, 2246822507
    %v139 = vmul.u32 %v135, 2246822507
    %v140 = vmul.u32 %v136, 2246822507
    %v141 = vshrl.u32 %v137, 13
    %v142 = vshrl.u32 %v138, 13
    %v143 = vshrl.u32 %v139, 13
    %v144 = vshrl.u32 %v140, 13
    %v145 = vxor.u32 %v137, %v141
    %v146 = vxor.u32 %v138, %v142
    %v147 = vxor.u32 %v139, %v143
    %v148 = vxor.u32 %v140, %v144
    %v149 = vmul.u32 %v145, 3266489909
    %v150 = vmul.u32 %v146, 3266489909
    %v151 = vmul.u32 %v147, 3266489909
    %v152 = vmul.u32 %v148, 3266489909
    %v153 = vshrl.u32 %v149, 16
    %v154 = vshrl.u32 %v150, 16
    %v155 = vshrl.u32 %v151, 16
    %v156 = vshrl.u32 %v152, 16
    %v157 = vxor.u32 %v149, %v153
    %v158 = vxor.u32 %v150, %v154
    %v159 = vxor.u32 %v151, %v155
    %v160 = vxor.u32 %v152, %v156
    %v161 = vshrl.u32 %v157, 16
    %v162 = vshrl.u32 %v158, 16
    %v163 = vshrl.u32 %v159, 16
    %v164 = vshrl.u32 %v160, 16
    %v165 = vxor.u32 %v157, %v161
    %v166 = vxor.u32 %v158, %v162
    %v167 = vxor.u32 %v159, %v163
    %v168 = vxor.u32 %v160, %v164
    %v169 = vmul.u32 %v165, 2246822507
    %v170 = vmul.u32 %v166, 2246822507
    %v171 = vmul.u32 %v167, 2246822507
    %v172 = vmul.u32 %v168, 2246822507
    %v173 = vshrl.u32 %v169, 13
    %v174 = vshrl.u32 %v170, 13
    %v175 = vshrl.u32 %v171, 13
    %v176 = vshrl.u32 %v172, 13
    %v177 = vxor.u32 %v169, %v173
    %v178 = vxor.u32 %v170, %v174
    %v179 = vxor.u32 %v171, %v175
    %v180 = vxor.u32 %v172, %v176
    %v181 = vmul.u32 %v177, 3266489909
    %v182 = vmul.u32 %v178, 3266489909
    %v183 = vmul.u32 %v179, 3266489909
    %v184 = vmul.u32 %v180, 3266489909
    %v185 = vshrl.u32 %v181, 16
    %v186 = vshrl.u32 %v182, 16
    %v187 = vshrl.u32 %v183, 16
    %v188 = vshrl.u32 %v184, 16
    %v189 = vxor.u32 %v181, %v185
    %v190 = vxor.u32 %v182, %v186
    %v191 = vxor.u32 %v183, %v187
    %v192 = vxor.u32 %v184, %v188
    %v193 = vshrl.u32 %v117, 8
    %v194 = vshrl.u32 %v118, 8
    %v195 = vshrl.u32 %v119, 8
    %v196 = vshrl.u32 %v120, 8
    %v197 = vcvt.s32.f32 %v193
    %v198 = vcvt.s32.f32 %v194
    %v199 = vcvt.s32.f32 %v195
    %v200 = vcvt.s32.f32 %v196
    %v201 = vadd.f32 %v197, 0.5
    %v202 = vadd.f32 %v198, 0.5
    %v203 = vadd.f32 %v199, 0.5
    %v204 = vadd.f32 %v200, 0.5
    %v205 = vmul.f32 %v201, 5.9604645e-08
    %v206 = vmul.f32 %v202, 5.9604645e-08
    %v207 = vmul.f32 %v203, 5.9604645e-08
    %v208 = vmul.f32 %v204, 5.9604645e-08
    %v209 = vshrl.u32 %v189, 8
    %v210 = vshrl.u32 %v190, 8
    %v211 = vshrl.u32 %v191, 8
    %v212 = vshrl.u32 %v192, 8
    %v213 = vcvt.s32.f32 %v209
    %v214 = vcvt.s32.f32 %v210
    %v215 = vcvt.s32.f32 %v211
    %v216 = vcvt.s32.f32 %v212
    %v217 = vadd.f32 %v213, 0.5
    %v218 = vadd.f32 %v214, 0.5
    %v219 = vadd.f32 %v215, 0.5
    %v220 = vadd.f32 %v216, 0.5
    %v221 = vmul.f32 %v217, 5.9604645e-08
    %v222 = vmul.f32 %v218, 5.9604645e-08
    %v223 = vmul.f32 %v219, 5.9604645e-08
    %v224 = vmul.f32 %v220, 5.9604645e-08
    %v225 = vlog2.pop %v205
    %v226 = vmul.f32 %v225, 0.6931472
    %v227 = vlog2.pop %v206
    %v228 = vmul.f32 %v227, 0.6931472
    %v229 = vlog2.pop %v207
    %v230 = vmul.f32 %v229, 0.6931472
    %v231 = vlog2.pop %v208
    %v232 = vmul.f32 %v231, 0.6931472
    %v233 = vmul.f32 %v226, -2.0
    %v234 = vmul.f32 %v228, -2.0
    %v235 = vmul.f32 %v230, -2.0
    %v236 = vmul.f32 %v232, -2.0
    %v237 = vrsqrt.pop %v233
    %v238 = vmul.f32 %v233, %v237
    %vm239 = vcmp.eq.f32.partialorder %v233, inf
    %v240 = vsel %vm239, %v233, %v238
    %vm241 = vcmp.eq.f32.partialorder %v233, 0.0
    %v242 = vand.u32 %v233, 2147483648
    %v243 = vsel %vm241, %v242, %v240
    %v244 = vrsqrt.pop %v234
    %v245 = vmul.f32 %v234, %v244
    %vm246 = vcmp.eq.f32.partialorder %v234, inf
    %v247 = vsel %vm246, %v234, %v245
    %vm248 = vcmp.eq.f32.partialorder %v234, 0.0
    %v249 = vand.u32 %v234, 2147483648
    %v250 = vsel %vm248, %v249, %v247
    %v251 = vrsqrt.pop %v235
    %v252 = vmul.f32 %v235, %v251
    %vm253 = vcmp.eq.f32.partialorder %v235, inf
    %v254 = vsel %vm253, %v235, %v252
    %vm255 = vcmp.eq.f32.partialorder %v235, 0.0
    %v256 = vand.u32 %v235, 2147483648
    %v257 = vsel %vm255, %v256, %v254
    %v258 = vrsqrt.pop %v236
    %v259 = vmul.f32 %v236, %v258
    %vm260 = vcmp.eq.f32.partialorder %v236, inf
    %v261 = vsel %vm260, %v236, %v259
    %vm262 = vcmp.eq.f32.partialorder %v236, 0.0
    %v263 = vand.u32 %v236, 2147483648
    %v264 = vsel %vm262, %v263, %v261
    %v265 = vmul.f32 %v221, 6.2831855
    %v266 = vmul.f32 %v222, 6.2831855
    %v267 = vmul.f32 %v223, 6.2831855
    %v268 = vmul.f32 %v224, 6.2831855
    %v269 = vand.u32 2147483647, %v265
    %vm270 = vcmp.le.f32.partialorder %v269, 0.7853982
    %vm271 = vcmp.lt.s32.totalorder %v265, 0
    %v272 = vand.u32 %v265, 2139095040
    %v273 = vshrl.u32 %v272, 23
    %v274 = vsub.s32 %v273, 127
    %v275 = vand.u32 2147483647, %v265
    %v276 = vand.u32 %v275, 8388607
    %v277 = vor.u32 %v276, 8388608
    %v278 = vsub.s32 0, %v277
    %v279 = vadd.s32 %v274, 1
    %vm280 = vcmp.gt.s32.totalorder %v279, 0
    %v281 = vsel %vm280, %v279, 0
    %v282 = vshrl.u32 %v281, 5
    %v283 = vand.u32 %v281, 31
    %v284 = vsub.s32 32, %v283
    %v285 = vshrl.u32 683565275, %v284
    %v286 = vshll.u32 683565275, %v283
    %v287 = vshrl.u32 2475754826, %v284
    %v288 = vor.u32 %v286, %v287
    %v289 = vshll.u32 2475754826, %v283
    %v290 = vshrl.u32 2131351028, %v284
    %v291 = vor.u32 %v289, %v290
    %v292 = vshll.u32 2131351028, %v283
    %v293 = vshrl.u32 2102212464, %v284
    %v294 = vor.u32 %v292, %v293
    %v295 = vshll.u32 2102212464, %v283
    %v296 = vshrl.u32 920167782, %v284
    %v297 = vor.u32 %v295, %v296
    %v298 = vshll.u32 920167782, %v283
    %v299 = vshrl.u32 1326507024, %v284
    %v300 = vor.u32 %v298, %v299
    %vm301 = vcmp.lt.s32.totalorder %v282, 1
    %vm302 = vcmp.lt.s32.totalorder %v282, 2
    %vm303 = vcmp.lt.s32.totalorder %v282, 3
    %vm304 = vcmp.lt.s32.totalorder %v282, 4
    %v305 = vsel %vm301, %v285, %v288
    %v306 = vsel %vm304, %v294, 2102212464
    %v307 = vsel %vm303, %v291, %v306
    %v308 = vsel %vm302, %v305, %v307
    %v309 = vsel %vm301, %v288, %v291
    %v310 = vsel %vm304, %v297, 920167782
    %v311 = vsel %vm303, %v294, %v310
    %v312 = vsel %vm302, %v309, %v311
    %v313 = vsel %vm301, %v291, %v294
    %v314 = vsel %vm304, %v300, 1326507024
    %v315 = vsel %vm303, %v297, %v314
    %v316 = vsel %vm302, %v313, %v315
    %v317 = vshll.u32 %v277, 8
    %v318 = vmul.u32.u64.compose %v317, %v316
    %v319 = vextract.low.u32 %v318
    %v320 = vextract.high.u32 %v318
    %v321 = vmul.u32.u64.compose %v317, %v312
    %v322 = vextract.low.u32 %v321
    %v323 = vextract.high.u32 %v321
    %v324 = vmul.u32 %v317, %v308
    %v325 = vadd.s32 %v320, %v322
    %vm326 = vc.u32 %v320, %v322
    %v327 = vadd.s32 %v323, 1
    %v328 = vsel %vm326, %v327, %v323
    %v329 = vadd.s32 %v324, %v328
    %v330 = vadd.s32 %v329, 536870912
    %v331 = vshrl.u32 %v330, 30
    %v332 = vshll.u32 %v331, 30
    %v333 = vsub.s32 %v329, %v332
    %vm334 = vcmp.lt.s32.totalorder %v333, 0
    %v335 = vsub.s32 0, %v333
    %v336 = vsel %vm334, %v335, %v333
    %v337 = vclz %v336
    %v338 = vsub.s32 %v337, 2
    %vm339 = vcmp.gt.s32.totalorder 0, %v338
    %v340 = vsel %vm339, 0, %v338
    %v341 = vsub.s32 32, %v340
    %v342 = vshll.u32 %v333, %v340
    %v343 = vshrl.u32 %v325, %v341
    %v344 = vor.u32 %v342, %v343
    %v345 = vsub.s32 4294967266, %v340
    %v346 = vadd.s32 %v345, 127
    %v347 = vshll.u32 %v346, 23
    %v348 = vor.u32 4788187, %v347
    %v349 = vand.u32 2147483647, %v348
    %v351 = vcvt.s32.f32 %v344
    %v352 = vmul.f32 %v351, %v349
    %v353 = vxor.u32 %v352, 2147483648
    %v354 = vsel %vm271, %v353, %v352
    %v355 = vsub.s32 4, %v331
    %v356 = vsel %vm271, %v355, %v331
    %v357 = vsel %vm270, %v265, %v354
    %v358 = vsel %vm270, 0, %v356
    %v359 = vcosq.f32.pop %v357
    %v360 = vsinq.f32.pop %v357
    %vm361 = vweird.f32 %v265
    %v362 = vand.u32 %v358, 3
    %vm363 = vcmp.lt.s32.totalorder %v362, 2
    %vm364 = vcmp.eq.s32.totalorder %v362, 0
    %v365 = vxor.u32 %v360, 2147483648
    %v366 = vsel %vm364, %v359, %v365
    %vm367 = vcmp.eq.s32.totalorder %v362, 2
    %v368 = vxor.u32 %v359, 2147483648
    %v369 = vsel %vm367, %v368, %v360
    %v370 = vsel %vm363, %v366, %v369
    %v371 = vsel %vm361, nan, %v370
    %v372 = vand.u32 2147483647, %v266
    %vm373 = vcmp.le.f32.partialorder %v372, 0.7853982
    %vm374 = vcmp.lt.s32.totalorder %v266, 0
    %v375 = vand.u32 %v266, 2139095040
    %v376 = vshrl.u32 %v375, 23
    %v377 = vsub.s32 %v376, 127
    %v378 = vand.u32 2147483647, %v266
    %v379 = vand.u32 %v378, 8388607
    %v380 = vor.u32 %v379, 8388608
    %v381 = vsub.s32 0, %v380
    %v382 = vadd.s32 %v377, 1
    %vm383 = vcmp.gt.s32.totalorder %v382, 0
    %v384 = vsel %vm383, %v382, 0
    %v385 = vshrl.u32 %v384, 5
    %v386 = vand.u32 %v384, 31
    %v387 = vsub.s32 32, %v386
    %v388 = vshrl.u32 683565275, %v387
    %v389 = vshll.u32 683565275, %v386
    %v390 = vshrl.u32 2475754826, %v387
    %v391 = vor.u32 %v389, %v390
    %v392 = vshll.u32 2475754826, %v386
    %v393 = vshrl.u32 2131351028, %v387
    %v394 = vor.u32 %v392, %v393
    %v395 = vshll.u32 2131351028, %v386
    %v396 = vshrl.u32 2102212464, %v387
    %v397 = vor.u32 %v395, %v396
    %v398 = vshll.u32 2102212464, %v386
    %v399 = vshrl.u32 920167782, %v387
    %v400 = vor.u32 %v398, %v399
    %v401 = vshll.u32 920167782, %v386
    %v402 = vshrl.u32 1326507024, %v387
    %v403 = vor.u32 %v401, %v402
    %vm404 = vcmp.lt.s32.totalorder %v385, 1
    %vm405 = vcmp.lt.s32.totalorder %v385, 2
    %vm406 = vcmp.lt.s32.totalorder %v385, 3
    %vm407 = vcmp.lt.s32.totalorder %v385, 4
    %v408 = vsel %vm404, %v388, %v391
    %v409 = vsel %vm407, %v397, 2102212464
    %v410 = vsel %vm406, %v394, %v409
    %v411 = vsel %vm405, %v408, %v410
    %v412 = vsel %vm404, %v391, %v394
    %v413 = vsel %vm407, %v400, 920167782
    %v414 = vsel %vm406, %v397, %v413
    %v415 = vsel %vm405, %v412, %v414
    %v416 = vsel %vm404, %v394, %v397
    %v417 = vsel %vm407, %v403, 1326507024
    %v418 = vsel %vm406, %v400, %v417
    %v419 = vsel %vm405, %v416, %v418
    %v420 = vshll.u32 %v380, 8
    %v421 = vmul.u32.u64.compose %v420, %v419
    %v422 = vextract.low.u32 %v421
    %v423 = vextract.high.u32 %v421
    %v424 = vmul.u32.u64.compose %v420, %v415
    %v425 = vextract.low.u32 %v424
    %v426 = vextract.high.u32 %v424
    %v427 = vmul.u32 %v420, %v411
    %v428 = vadd.s32 %v423, %v425
    %vm429 = vc.u32 %v423, %v425
    %v430 = vadd.s32 %v426, 1
    %v431 = vsel %vm429, %v430, %v426
    %v432 = vadd.s32 %v427, %v431
    %v433 = vadd.s32 %v432, 536870912
    %v434 = vshrl.u32 %v433, 30
    %v435 = vshll.u32 %v434, 30
    %v436 = vsub.s32 %v432, %v435
    %vm437 = vcmp.lt.s32.totalorder %v436, 0
    %v438 = vsub.s32 0, %v436
    %v439 = vsel %vm437, %v438, %v436
    %v440 = vclz %v439
    %v441 = vsub.s32 %v440, 2
    %vm442 = vcmp.gt.s32.totalorder 0, %v441
    %v443 = vsel %vm442, 0, %v441
    %v444 = vsub.s32 32, %v443
    %v445 = vshll.u32 %v436, %v443
    %v446 = vshrl.u32 %v428, %v444
    %v447 = vor.u32 %v445, %v446
    %v448 = vsub.s32 4294967266, %v443
    %v449 = vadd.s32 %v448, 127
    %v450 = vshll.u32 %v449, 23
    %v451 = vor.u32 4788187, %v450
    %v452 = vand.u32 2147483647, %v451
    %v454 = vcvt.s32.f32 %v447
    %v455 = vmul.f32 %v454, %v452
    %v456 = vxor.u32 %v455, 2147483648
    %v457 = vsel %vm374, %v456, %v455
    %v458 = vsub.s32 4, %v434
    %v459 = vsel %vm374, %v458, %v434
    %v460 = vsel %vm373, %v266, %v457
    %v461 = vsel %vm373, 0, %v459
    %v462 = vcosq.f32.pop %v460
    %v463 = vsinq.f32.pop %v460
    %vm464 = vweird.f32 %v266
    %v465 = vand.u32 %v461, 3
    %vm466 = vcmp.lt.s32.totalorder %v465, 2
    %vm467 = vcmp.eq.s32.totalorder %v465, 0
    %v468 = vxor.u32 %v463, 2147483648
    %v469 = vsel %vm467, %v462, %v468
    %vm470 = vcmp.eq.s32.totalorder %v465, 2
    %v471 = vxor.u32 %v462, 2147483648
    %v472 = vsel %vm470, %v471, %v463
    %v473 = vsel %vm466, %v469, %v472
    %v474 = vsel %vm464, nan, %v473
    %v475 = vand.u32 2147483647, %v267
    %vm476 = vcmp.le.f32.partialorder %v475, 0.7853982
    %vm477 = vcmp.lt.s32.totalorder %v267, 0
    %v478 = vand.u32 %v267, 2139095040
    %v479 = vshrl.u32 %v478, 23
    %v480 = vsub.s32 %v479, 127
    %v481 = vand.u32 2147483647, %v267
    %v482 = vand.u32 %v481, 8388607
    %v483 = vor.u32 %v482, 8388608
    %v484 = vsub.s32 0, %v483
    %v485 = vadd.s32 %v480, 1
    %vm486 = vcmp.gt.s32.totalorder %v485, 0
    %v487 = vsel %vm486, %v485, 0
    %v488 = vshrl.u32 %v487, 5
    %v489 = vand.u32 %v487, 31
    %v490 = vsub.s32 32, %v489
    %v491 = vshrl.u32 683565275, %v490
    %v492 = vshll.u32 683565275, %v489
    %v493 = vshrl.u32 2475754826, %v490
    %v494 = vor.u32 %v492, %v493
    %v495 = vshll.u32 2475754826, %v489
    %v496 = vshrl.u32 2131351028, %v490
    %v497 = vor.u32 %v495, %v496
    %v498 = vshll.u32 2131351028, %v489
    %v499 = vshrl.u32 2102212464, %v490
    %v500 = vor.u32 %v498, %v499
    %v501 = vshll.u32 2102212464, %v489
    %v502 = vshrl.u32 920167782, %v490
    %v503 = vor.u32 %v501, %v502
    %v504 = vshll.u32 920167782, %v489
    %v505 = vshrl.u32 1326507024, %v490
    %v506 = vor.u32 %v504, %v505
    %vm507 = vcmp.lt.s32.totalorder %v488, 1
    %vm508 = vcmp.lt.s32.totalorder %v488, 2
    %vm509 = vcmp.lt.s32.totalorder %v488, 3
    %vm510 = vcmp.lt.s32.totalorder %v488, 4
    %v511 = vsel %vm507, %v491, %v494
    %v512 = vsel %vm510, %v500, 2102212464
    %v513 = vsel %vm509, %v497, %v512
    %v514 = vsel %vm508, %v511, %v513
    %v515 = vsel %vm507, %v494, %v497
    %v516 = vsel %vm510, %v503, 920167782
    %v517 = vsel %vm509, %v500, %v516
    %v518 = vsel %vm508, %v515, %v517
    %v519 = vsel %vm507, %v497, %v500
    %v520 = vsel %vm510, %v506, 1326507024
    %v521 = vsel %vm509, %v503, %v520
    %v522 = vsel %vm508, %v519, %v521
    %v523 = vshll.u32 %v483, 8
    %v524 = vmul.u32.u64.compose %v523, %v522
    %v525 = vextract.low.u32 %v524
    %v526 = vextract.high.u32 %v524
    %v527 = vmul.u32.u64.compose %v523, %v518
    %v528 = vextract.low.u32 %v527
    %v529 = vextract.high.u32 %v527
    %v530 = vmul.u32 %v523, %v514
    %v531 = vadd.s32 %v526, %v528
    %vm532 = vc.u32 %v526, %v528
    %v533 = vadd.s32 %v529, 1
    %v534 = vsel %vm532, %v533, %v529
    %v535 = vadd.s32 %v530, %v534
    %v536 = vadd.s32 %v535, 536870912
    %v537 = vshrl.u32 %v536, 30
    %v538 = vshll.u32 %v537, 30
    %v539 = vsub.s32 %v535, %v538
    %vm540 = vcmp.lt.s32.totalorder %v539, 0
    %v541 = vsub.s32 0, %v539
    %v542 = vsel %vm540, %v541, %v539
    %v543 = vclz %v542
    %v544 = vsub.s32 %v543, 2
    %vm545 = vcmp.gt.s32.totalorder 0, %v544
    %v546 = vsel %vm545, 0, %v544
    %v547 = vsub.s32 32, %v546
    %v548 = vshll.u32 %v539, %v546
    %v549 = vshrl.u32 %v531, %v547
    %v550 = vor.u32 %v548, %v549
    %v551 = vsub.s32 4294967266, %v546
    %v552 = vadd.s32 %v551, 127
    %v553 = vshll.u32 %v552, 23
    %v554 = vor.u32 4788187, %v553
    %v555 = vand.u32 2147483647, %v554
    %v557 = vcvt.s32.f32 %v550
    %v558 = vmul.f32 %v557, %v555
    %v559 = vxor.u32 %v558, 2147483648
    %v560 = vsel %vm477, %v559, %v558
    %v561 = vsub.s32 4, %v537
    %v562 = vsel %vm477, %v561, %v537
    %v563 = vsel %vm476, %v267, %v560
    %v564 = vsel %vm476, 0, %v562
    %v565 = vcosq.f32.pop %v563
    %v566 = vsinq.f32.pop %v563
    %vm567 = vweird.f32 %v267
    %v568 = vand.u32 %v564, 3
    %vm569 = vcmp.lt.s32.totalorder %v568, 2
    %vm570 = vcmp.eq.s32.totalorder %v568, 0
    %v571 = vxor.u32 %v566, 2147483648
    %v572 = vsel %vm570, %v565, %v571
    %vm573 = vcmp.eq.s32.totalorder %v568, 2
    %v574 = vxor.u32 %v565, 2147483648
    %v575 = vsel %vm573, %v574, %v566
    %v576 = vsel %vm569, %v572, %v575
    %v577 = vsel %vm567, nan, %v576
    %v578 = vand.u32 2147483647, %v268
    %vm579 = vcmp.le.f32.partialorder %v578, 0.7853982
    %vm580 = vcmp.lt.s32.totalorder %v268, 0
    %v581 = vand.u32 %v268, 2139095040
    %v582 = vshrl.u32 %v581, 23
    %v583 = vsub.s32 %v582, 127
    %v584 = vand.u32 2147483647, %v268
    %v585 = vand.u32 %v584, 8388607
    %v586 = vor.u32 %v585, 8388608
    %v587 = vsub.s32 0, %v586
    %v588 = vadd.s32 %v583, 1
    %vm589 = vcmp.gt.s32.totalorder %v588, 0
    %v590 = vsel %vm589, %v588, 0
    %v591 = vshrl.u32 %v590, 5
    %v592 = vand.u32 %v590, 31
    %v593 = vsub.s32 32, %v592
    %v594 = vshrl.u32 683565275, %v593
    %v595 = vshll.u32 683565275, %v592
    %v596 = vshrl.u32 2475754826, %v593
    %v597 = vor.u32 %v595, %v596
    %v598 = vshll.u32 2475754826, %v592
    %v599 = vshrl.u32 2131351028, %v593
    %v600 = vor.u32 %v598, %v599
    %v601 = vshll.u32 2131351028, %v592
    %v602 = vshrl.u32 2102212464, %v593
    %v603 = vor.u32 %v601, %v602
    %v604 = vshll.u32 2102212464, %v592
    %v605 = vshrl.u32 920167782, %v593
    %v606 = vor.u32 %v604, %v605
    %v607 = vshll.u32 920167782, %v592
    %v608 = vshrl.u32 1326507024, %v593
    %v609 = vor.u32 %v607, %v608
    %vm610 = vcmp.lt.s32.totalorder %v591, 1
    %vm611 = vcmp.lt.s32.totalorder %v591, 2
    %vm612 = vcmp.lt.s32.totalorder %v591, 3
    %vm613 = vcmp.lt.s32.totalorder %v591, 4
    %v614 = vsel %vm610, %v594, %v597
    %v615 = vsel %vm613, %v603, 2102212464
    %v616 = vsel %vm612, %v600, %v615
    %v617 = vsel %vm611, %v614, %v616
    %v618 = vsel %vm610, %v597, %v600
    %v619 = vsel %vm613, %v606, 920167782
    %v620 = vsel %vm612, %v603, %v619
    %v621 = vsel %vm611, %v618, %v620
    %v622 = vsel %vm610, %v600, %v603
    %v623 = vsel %vm613, %v609, 1326507024
    %v624 = vsel %vm612, %v606, %v623
    %v625 = vsel %vm611, %v622, %v624
    %v626 = vshll.u32 %v586, 8
    %v627 = vmul.u32.u64.compose %v626, %v625
    %v628 = vextract.low.u32 %v627
    %v629 = vextract.high.u32 %v627
    %v630 = vmul.u32.u64.compose %v626, %v621
    %v631 = vextract.low.u32 %v630
    %v632 = vextract.high.u32 %v630
    %v633 = vmul.u32 %v626, %v617
    %v634 = vadd.s32 %v629, %v631
    %vm635 = vc.u32 %v629, %v631
    %v636 = vadd.s32 %v632, 1
    %v637 = vsel %vm635, %v636, %v632
    %v638 = vadd.s32 %v633, %v637
    %v639 = vadd.s32 %v638, 536870912
    %v640 = vshrl.u32 %v639, 30
    %v641 = vshll.u32 %v640, 30
    %v642 = vsub.s32 %v638, %v641
    %vm643 = vcmp.lt.s32.totalorder %v642, 0
    %v644 = vsub.s32 0, %v642
    %v645 = vsel %vm643, %v644, %v642
    %v646 = vclz %v645
    %v647 = vsub.s32 %v646, 2
    %vm648 = vcmp.gt.s32.totalorder 0, %v647
    %v649 = vsel %vm648, 0, %v647
    %v650 = vsub.s32 32, %v649
    %v651 = vshll.u32 %v642, %v649
    %v652 = vshrl.u32 %v634, %v650
    %v653 = vor.u32 %v651, %v652
    %v654 = vsub.s32 4294967266, %v649
    %v655 = vadd.s32 %v654, 127
    %v656 = vshll.u32 %v655, 23
    %v657 = vor.u32 4788187, %v656
    %v658 = vand.u32 2147483647, %v657
    %v660 = vcvt.s32.f32 %v653
    %v661 = vmul.f32 %v660, %v658
    %v662 = vxor.u32 %v661, 2147483648
    %v663 = vsel %vm580, %v662, %v661
    %v664 = vsub.s32 4, %v640
    %v665 = vsel %vm580, %v664, %v640
    %v666 = vsel %vm579, %v268, %v663
    %v667 = vsel %vm579, 0, %v665
    %v668 = vcosq.f32.pop %v666
    %v669 = vsinq.f32.pop %v666
    %vm670 = vweird.f32 %v268
    %v671 = vand.u32 %v667, 3
    %vm672 = vcmp.lt.s32.totalorder %v671, 2
    %vm673 = vcmp.eq.s32.totalorder %v671, 0
    %v674 = vxor.u32 %v669, 2147483648
    %v675 = vsel %vm673, %v668, %v674
    %vm676 = vcmp.eq.s32.totalorder %v671, 2
    %v677 = vxor.u32 %v668, 2147483648
    %v678 = vsel %vm676, %v677, %v669
    %v679 = vsel %vm672, %v675, %v678
    %v680 = vsel %vm670, nan, %v679
    %v681 = vmul.f32 %v243, %v371
    %v682 = vmul.f32 %v250, %v474
    %v683 = vmul.f32 %v257, %v577
    %v684 = vmul.f32 %v264, %v680
    %v685 = vmul.f32 %v681, 0.1
    %v686 = vmul.f32 %v682, 0.1
    %v687 = vmul.f32 %v683, 0.1
    %v688 = vmul.f32 %v684, 0.1
    %v689 = vadd.f32 %v685, 0.0
    %v690 = vadd.f32 %v686, 0.0
    %v691 = vadd.f32 %v687, 0.0
    %v692 = vadd.f32 %v688, 0.0
    %v693 = vand.u32 2147483647, %v265
    %vm694 = vcmp.le.f32.partialorder %v693, 0.7853982
    %vm695 = vcmp.lt.s32.totalorder %v265, 0
    %v696 = vand.u32 %v265, 2139095040
    %v697 = vshrl.u32 %v696, 23
    %v698 = vsub.s32 %v697, 127
    %v699 = vand.u32 2147483647, %v265
    %v700 = vand.u32 %v699, 8388607
    %v701 = vor.u32 %v700, 8388608
    %v702 = vsub.s32 0, %v701
    %v703 = vadd.s32 %v698, 1
    %vm704 = vcmp.gt.s32.totalorder %v703, 0
    %v705 = vsel %vm704, %v703, 0
    %v706 = vshrl.u32 %v705, 5
    %v707 = vand.u32 %v705, 31
    %v708 = vsub.s32 32, %v707
    %v709 = vshrl.u32 683565275, %v708
    %v710 = vshll.u32 683565275, %v707
    %v711 = vshrl.u32 2475754826, %v708
    %v712 = vor.u32 %v710, %v711
    %v713 = vshll.u32 2475754826, %v707
    %v714 = vshrl.u32 2131351028, %v708
    %v715 = vor.u32 %v713, %v714
    %v716 = vshll.u32 2131351028, %v707
    %v717 = vshrl.u32 2102212464, %v708
    %v718 = vor.u32 %v716, %v717
    %v719 = vshll.u32 2102212464, %v707
    %v720 = vshrl.u32 920167782, %v708
    %v721 = vor.u32 %v719, %v720
    %v722 = vshll.u32 920167782, %v707
    %v723 = vshrl.u32 1326507024, %v708
    %v724 = vor.u32 %v722, %v723
    %vm725 = vcmp.lt.s32.totalorder %v706, 1
    %vm726 = vcmp.lt.s32.totalorder %v706, 2
    %vm727 = vcmp.lt.s32.totalorder %v706, 3
    %vm728 = vcmp.lt.s32.totalorder %v706, 4
    %v729 = vsel %vm725, %v709, %v712
    %v730 = vsel %vm728, %v718, 2102212464
    %v731 = vsel %vm727, %v715, %v730
    %v732 = vsel %vm726, %v729, %v731
    %v733 = vsel %vm725, %v712, %v715
    %v734 = vsel %vm728, %v721, 920167782
    %v735 = vsel %vm727, %v718, %v734
    %v736 = vsel %vm726, %v733, %v735
    %v737 = vsel %vm725, %v715, %v718
    %v738 = vsel %vm728, %v724, 1326507024
    %v739 = vsel %vm727, %v721, %v738
    %v740 = vsel %vm726, %v737, %v739
    %v741 = vshll.u32 %v701, 8
    %v742 = vmul.u32.u64.compose %v741, %v740
    %v743 = vextract.low.u32 %v742
    %v744 = vextract.high.u32 %v742
    %v745 = vmul.u32.u64.compose %v741, %v736
    %v746 = vextract.low.u32 %v745
    %v747 = vextract.high.u32 %v745
    %v748 = vmul.u32 %v741, %v732
    %v749 = vadd.s32 %v744, %v746
    %vm750 = vc.u32 %v744, %v746
    %v751 = vadd.s32 %v747, 1
    %v752 = vsel %vm750, %v751, %v747
    %v753 = vadd.s32 %v748, %v752
    %v754 = vadd.s32 %v753, 536870912
    %v755 = vshrl.u32 %v754, 30
    %v756 = vshll.u32 %v755, 30
    %v757 = vsub.s32 %v753, %v756
    %vm758 = vcmp.lt.s32.totalorder %v757, 0
    %v759 = vsub.s32 0, %v757
    %v760 = vsel %vm758, %v759, %v757
    %v761 = vclz %v760
    %v762 = vsub.s32 %v761, 2
    %vm763 = vcmp.gt.s32.totalorder 0, %v762
    %v764 = vsel %vm763, 0, %v762
    %v765 = vsub.s32 32, %v764
    %v766 = vshll.u32 %v757, %v764
    %v767 = vshrl.u32 %v749, %v765
    %v768 = vor.u32 %v766, %v767
    %v769 = vsub.s32 4294967266, %v764
    %v770 = vadd.s32 %v769, 127
    %v771 = vshll.u32 %v770, 23
    %v772 = vor.u32 4788187, %v771
    %v773 = vand.u32 2147483647, %v772
    %v775 = vcvt.s32.f32 %v768
    %v776 = vmul.f32 %v775, %v773
    %v777 = vxor.u32 %v776, 2147483648
    %v778 = vsel %vm695, %v777, %v776
    %v779 = vsub.s32 4, %v755
    %v780 = vsel %vm695, %v779, %v755
    %v781 = vsel %vm694, %v265, %v778
    %v782 = vsel %vm694, 0, %v780
    %v783 = vcosq.f32.pop %v781
    %v784 = vsinq.f32.pop %v781
    %vm785 = vweird.f32 %v265
    %v786 = vadd.s32 %v782, 3
    %v787 = vand.u32 %v786, 3
    %vm788 = vcmp.lt.s32.totalorder %v787, 2
    %vm789 = vcmp.eq.s32.totalorder %v787, 0
    %v790 = vxor.u32 %v784, 2147483648
    %v791 = vsel %vm789, %v783, %v790
    %vm792 = vcmp.eq.s32.totalorder %v787, 2
    %v793 = vxor.u32 %v783, 2147483648
    %v794 = vsel %vm792, %v793, %v784
    %v795 = vsel %vm788, %v791, %v794
    %v796 = vsel %vm785, nan, %v795
    %v797 = vand.u32 2147483647, %v266
    %vm798 = vcmp.le.f32.partialorder %v797, 0.7853982
    %vm799 = vcmp.lt.s32.totalorder %v266, 0
    %v800 = vand.u32 %v266, 2139095040
    %v801 = vshrl.u32 %v800, 23
    %v802 = vsub.s32 %v801, 127
    %v803 = vand.u32 2147483647, %v266
    %v804 = vand.u32 %v803, 8388607
    %v805 = vor.u32 %v804, 8388608
    %v806 = vsub.s32 0, %v805
    %v807 = vadd.s32 %v802, 1
    %vm808 = vcmp.gt.s32.totalorder %v807, 0
    %v809 = vsel %vm808, %v807, 0
    %v810 = vshrl.u32 %v809, 5
    %v811 = vand.u32 %v809, 31
    %v812 = vsub.s32 32, %v811
    %v813 = vshrl.u32 683565275, %v812
    %v814 = vshll.u32 683565275, %v811
    %v815 = vshrl.u32 2475754826, %v812
    %v816 = vor.u32 %v814, %v815
    %v817 = vshll.u32 2475754826, %v811
    %v818 = vshrl.u32 2131351028, %v812
    %v819 = vor.u32 %v817, %v818
    %v820 = vshll.u32 2131351028, %v811
    %v821 = vshrl.u32 2102212464, %v812
    %v822 = vor.u32 %v820, %v821
    %v823 = vshll.u32 2102212464, %v811
    %v824 = vshrl.u32 920167782, %v812
    %v825 = vor.u32 %v823, %v824
    %v826 = vshll.u32 920167782, %v811
    %v827 = vshrl.u32 1326507024, %v812
    %v828 = vor.u32 %v826, %v827
    %vm829 = vcmp.lt.s32.totalorder %v810, 1
    %vm830 = vcmp.lt.s32.totalorder %v810, 2
    %vm831 = vcmp.lt.s32.totalorder %v810, 3
    %vm832 = vcmp.lt.s32.totalorder %v810, 4
    %v833 = vsel %vm829, %v813, %v816
    %v834 = vsel %vm832, %v822, 2102212464
    %v835 = vsel %vm831, %v819, %v834
    %v836 = vsel %vm830, %v833, %v835
    %v837 = vsel %vm829, %v816, %v819
    %v838 = vsel %vm832, %v825, 920167782
    %v839 = vsel %vm831, %v822, %v838
    %v840 = vsel %vm830, %v837, %v839
    %v841 = vsel %vm829, %v819, %v822
    %v842 = vsel %vm832, %v828, 1326507024
    %v843 = vsel %vm831, %v825, %v842
    %v844 = vsel %vm830, %v841, %v843
    %v845 = vshll.u32 %v805, 8
    %v846 = vmul.u32.u64.compose %v845, %v844
    %v847 = vextract.low.u32 %v846
    %v848 = vextract.high.u32 %v846
    %v849 = vmul.u32.u64.compose %v845, %v840
    %v850 = vextract.low.u32 %v849
    %v851 = vextract.high.u32 %v849
    %v852 = vmul.u32 %v845, %v836
    %v853 = vadd.s32 %v848, %v850
    %vm854 = vc.u32 %v848, %v850
    %v855 = vadd.s32 %v851, 1
    %v856 = vsel %vm854, %v855, %v851
    %v857 = vadd.s32 %v852, %v856
    %v858 = vadd.s32 %v857, 536870912
    %v859 = vshrl.u32 %v858, 30
    %v860 = vshll.u32 %v859, 30
    %v861 = vsub.s32 %v857, %v860
    %vm862 = vcmp.lt.s32.totalorder %v861, 0
    %v863 = vsub.s32 0, %v861
    %v864 = vsel %vm862, %v863, %v861
    %v865 = vclz %v864
    %v866 = vsub.s32 %v865, 2
    %vm867 = vcmp.gt.s32.totalorder 0, %v866
    %v868 = vsel %vm867, 0, %v866
    %v869 = vsub.s32 32, %v868
    %v870 = vshll.u32 %v861, %v868
    %v871 = vshrl.u32 %v853, %v869
    %v872 = vor.u32 %v870, %v871
    %v873 = vsub.s32 4294967266, %v868
    %v874 = vadd.s32 %v873, 127
    %v875 = vshll.u32 %v874, 23
    %v876 = vor.u32 4788187, %v875
    %v877 = vand.u32 2147483647, %v876
    %v879 = vcvt.s32.f32 %v872
    %v880 = vmul.f32 %v879, %v877
    %v881 = vxor.u32 %v880, 2147483648
    %v882 = vsel %vm799, %v881, %v880
    %v883 = vsub.s32 4, %v859
    %v884 = vsel %vm799, %v883, %v859
    %v885 = vsel %vm798, %v266, %v882
    %v886 = vsel %vm798, 0, %v884
    %v887 = vcosq.f32.pop %v885
    %v888 = vsinq.f32.pop %v885
    %vm889 = vweird.f32 %v266
    %v890 = vadd.s32 %v886, 3
    %v891 = vand.u32 %v890, 3
    %vm892 = vcmp.lt.s32.totalorder %v891, 2
    %vm893 = vcmp.eq.s32.totalorder %v891, 0
    %v894 = vxor.u32 %v888, 2147483648
    %v895 = vsel %vm893, %v887, %v894
    %vm896 = vcmp.eq.s32.totalorder %v891, 2
    %v897 = vxor.u32 %v887, 2147483648
    %v898 = vsel %vm896, %v897, %v888
    %v899 = vsel %vm892, %v895, %v898
    %v900 = vsel %vm889, nan, %v899
    %v901 = vand.u32 2147483647, %v267
    %vm902 = vcmp.le.f32.partialorder %v901, 0.7853982
    %vm903 = vcmp.lt.s32.totalorder %v267, 0
    %v904 = vand.u32 %v267, 2139095040
    %v905 = vshrl.u32 %v904, 23
    %v906 = vsub.s32 %v905, 127
    %v907 = vand.u32 2147483647, %v267
    %v908 = vand.u32 %v907, 8388607
    %v909 = vor.u32 %v908, 8388608
    %v910 = vsub.s32 0, %v909
    %v911 = vadd.s32 %v906, 1
    %vm912 = vcmp.gt.s32.totalorder %v911, 0
    %v913 = vsel %vm912, %v911, 0
    %v914 = vshrl.u32 %v913, 5
    %v915 = vand.u32 %v913, 31
    %v916 = vsub.s32 32, %v915
    %v917 = vshrl.u32 683565275, %v916
    %v918 = vshll.u32 683565275, %v915
    %v919 = vshrl.u32 2475754826, %v916
    %v920 = vor.u32 %v918, %v919
    %v921 = vshll.u32 2475754826, %v915
    %v922 = vshrl.u32 2131351028, %v916
    %v923 = vor.u32 %v921, %v922
    %v924 = vshll.u32 2131351028, %v915
    %v925 = vshrl.u32 2102212464, %v916
    %v926 = vor.u32 %v924, %v925
    %v927 = vshll.u32 2102212464, %v915
    %v928 = vshrl.u32 920167782, %v916
    %v929 = vor.u32 %v927, %v928
    %v930 = vshll.u32 920167782, %v915
    %v931 = vshrl.u32 1326507024, %v916
    %v932 = vor.u32 %v930, %v931
    %vm933 = vcmp.lt.s32.totalorder %v914, 1
    %vm934 = vcmp.lt.s32.totalorder %v914, 2
    %vm935 = vcmp.lt.s32.totalorder %v914, 3
    %vm936 = vcmp.lt.s32.totalorder %v914, 4
    %v937 = vsel %vm933, %v917, %v920
    %v938 = vsel %vm936, %v926, 2102212464
    %v939 = vsel %vm935, %v923, %v938
    %v940 = vsel %vm934, %v937, %v939
    %v941 = vsel %vm933, %v920, %v923
    %v942 = vsel %vm936, %v929, 920167782
    %v943 = vsel %vm935, %v926, %v942
    %v944 = vsel %vm934, %v941, %v943
    %v945 = vsel %vm933, %v923, %v926
    %v946 = vsel %vm936, %v932, 1326507024
    %v947 = vsel %vm935, %v929, %v946
    %v948 = vsel %vm934, %v945, %v947
    %v949 = vshll.u32 %v909, 8
    %v950 = vmul.u32.u64.compose %v949, %v948
    %v951 = vextract.low.u32 %v950
    %v952 = vextract.high.u32 %v950
    %v953 = vmul.u32.u64.compose %v949, %v944
    %v954 = vextract.low.u32 %v953
    %v955 = vextract.high.u32 %v953
    %v956 = vmul.u32 %v949, %v940
    %v957 = vadd.s32 %v952, %v954
    %vm958 = vc.u32 %v952, %v954
    %v959 = vadd.s32 %v955, 1
    %v960 = vsel %vm958, %v959, %v955
    %v961 = vadd.s32 %v956, %v960
    %v962 = vadd.s32 %v961, 536870912
    %v963 = vshrl.u32 %v962, 30
    %v964 = vshll.u32 %v963, 30
    %v965 = vsub.s32 %v961, %v964
    %vm966 = vcmp.lt.s32.totalorder %v965, 0
    %v967 = vsub.s32 0, %v965
    %v968 = vsel %vm966, %v967, %v965
    %v969 = vclz %v968
    %v970 = vsub.s32 %v969, 2
    %vm971 = vcmp.gt.s32.totalorder 0, %v970
    %v972 = vsel %vm971, 0, %v970
    %v973 = vsub.s32 32, %v972
    %v974 = vshll.u32 %v965, %v972
    %v975 = vshrl.u32 %v957, %v973
    %v976 = vor.u32 %v974, %v975
    %v977 = vsub.s32 4294967266, %v972
    %v978 = vadd.s32 %v977, 127
    %v979 = vshll.u32 %v978, 23
    %v980 = vor.u32 4788187, %v979
    %v981 = vand.u32 2147483647, %v980
    %v983 = vcvt.s32.f32 %v976
    %v984 = vmul.f32 %v983, %v981
    %v985 = vxor.u32 %v984, 2147483648
    %v986 = vsel %vm903, %v985, %v984
    %v987 = vsub.s32 4, %v963
    %v988 = vsel %vm903, %v987, %v963
    %v989 = vsel %vm902, %v267, %v986
    %v990 = vsel %vm902, 0, %v988
    %v991 = vcosq.f32.pop %v989
    %v992 = vsinq.f32.pop %v989
    %vm993 = vweird.f32 %v267
    %v994 = vadd.s32 %v990, 3
    %v995 = vand.u32 %v994, 3
    %vm996 = vcmp.lt.s32.totalorder %v995, 2
    %vm997 = vcmp.eq.s32.totalorder %v995, 0
    %v998 = vxor.u32 %v992, 2147483648
    %v999 = vsel %vm997, %v991, %v998
    %vm1000 = vcmp.eq.s32.totalorder %v995, 2
    %v1001 = vxor.u32 %v991, 2147483648
    %v1002 = vsel %vm1000, %v1001, %v992
    %v1003 = vsel %vm996, %v999, %v1002
    %v1004 = vsel %vm993, nan, %v1003
    %v1005 = vand.u32 2147483647, %v268
    %vm1006 = vcmp.le.f32.partialorder %v1005, 0.7853982
    %vm1007 = vcmp.lt.s32.totalorder %v268, 0
    %v1008 = vand.u32 %v268, 2139095040
    %v1009 = vshrl.u32 %v1008, 23
    %v1010 = vsub.s32 %v1009, 127
    %v1011 = vand.u32 2147483647, %v268
    %v1012 = vand.u32 %v1011, 8388607
    %v1013 = vor.u32 %v1012, 8388608
    %v1014 = vsub.s32 0, %v1013
    %v1015 = vadd.s32 %v1010, 1
    %vm1016 = vcmp.gt.s32.totalorder %v1015, 0
    %v1017 = vsel %vm1016, %v1015, 0
    %v1018 = vshrl.u32 %v1017, 5
    %v1019 = vand.u32 %v1017, 31
    %v1020 = vsub.s32 32, %v1019
    %v1021 = vshrl.u32 683565275, %v1020
    %v1022 = vshll.u32 683565275, %v1019
    %v1023 = vshrl.u32 2475754826, %v1020
    %v1024 = vor.u32 %v1022, %v1023
    %v1025 = vshll.u32 2475754826, %v1019
    %v1026 = vshrl.u32 2131351028, %v1020
    %v1027 = vor.u32 %v1025, %v1026
    %v1028 = vshll.u32 2131351028, %v1019
    %v1029 = vshrl.u32 2102212464, %v1020
    %v1030 = vor.u32 %v1028, %v1029
    %v1031 = vshll.u32 2102212464, %v1019
    %v1032 = vshrl.u32 920167782, %v1020
    %v1033 = vor.u32 %v1031, %v1032
    %v1034 = vshll.u32 920167782, %v1019
    %v1035 = vshrl.u32 1326507024, %v1020
    %v1036 = vor.u32 %v1034, %v1035
    %vm1037 = vcmp.lt.s32.totalorder %v1018, 1
    %vm1038 = vcmp.lt.s32.totalorder %v1018, 2
    %vm1039 = vcmp.lt.s32.totalorder %v1018, 3
    %vm1040 = vcmp.lt.s32.totalorder %v1018, 4
    %v1041 = vsel %vm1037, %v1021, %v1024
    %v1042 = vsel %vm1040, %v1030, 2102212464
    %v1043 = vsel %vm1039, %v1027, %v1042
    %v1044 = vsel %vm1038, %v1041, %v1043
    %v1045 = vsel %vm1037, %v1024, %v1027
    %v1046 = vsel %vm1040, %v1033, 920167782
    %v1047 = vsel %vm1039, %v1030, %v1046
    %v1048 = vsel %vm1038, %v1045, %v1047
    %v1049 = vsel %vm1037, %v1027, %v1030
    %v1050 = vsel %vm1040, %v1036, 1326507024
    %v1051 = vsel %vm1039, %v1033, %v1050
    %v1052 = vsel %vm1038, %v1049, %v1051
    %v1053 = vshll.u32 %v1013, 8
    %v1054 = vmul.u32.u64.compose %v1053, %v1052
    %v1055 = vextract.low.u32 %v1054
    %v1056 = vextract.high.u32 %v1054
    %v1057 = vmul.u32.u64.compose %v1053, %v1048
    %v1058 = vextract.low.u32 %v1057
    %v1059 = vextract.high.u32 %v1057
    %v1060 = vmul.u32 %v1053, %v1044
    %v1061 = vadd.s32 %v1056, %v1058
    %vm1062 = vc.u32 %v1056, %v1058
    %v1063 = vadd.s32 %v1059, 1
    %v1064 = vsel %vm1062, %v1063, %v1059
    %v1065 = vadd.s32 %v1060, %v1064
    %v1066 = vadd.s32 %v1065, 536870912
    %v1067 = vshrl.u32 %v1066, 30
    %v1068 = vshll.u32 %v1067, 30
    %v1069 = vsub.s32 %v1065, %v1068
    %vm1070 = vcmp.lt.s32.totalorder %v1069, 0
    %v1071 = vsub.s32 0, %v1069
    %v1072 = vsel %vm1070, %v1071, %v1069
    %v1073 = vclz %v1072
    %v1074 = vsub.s32 %v1073, 2
    %vm1075 = vcmp.gt.s32.totalorder 0, %v1074
    %v1076 = vsel %vm1075, 0, %v1074
    %v1077 = vsub.s32 32, %v1076
    %v1078 = vshll.u32 %v1069, %v1076
    %v1079 = vshrl.u32 %v1061, %v1077
    %v1080 = vor.u32 %v1078, %v1079
    %v1081 = vsub.s32 4294967266, %v1076
    %v1082 = vadd.s32 %v1081, 127
    %v1083 = vshll.u32 %v1082, 23
    %v1084 = vor.u32 4788187, %v1083
    %v1085 = vand.u32 2147483647, %v1084
    %v1087 = vcvt.s32.f32 %v1080
    %v1088 = vmul.f32 %v1087, %v1085
    %v1089 = vxor.u32 %v1088, 2147483648
    %v1090 = vsel %vm1007, %v1089, %v1088
    %v1091 = vsub.s32 4, %v1067
    %v1092 = vsel %vm1007, %v1091, %v1067
    %v1093 = vsel %vm1006, %v268, %v1090
    %v1094 = vsel %vm1006, 0, %v1092
    %v1095 = vcosq.f32.pop %v1093
    %v1096 = vsinq.f32.pop %v1093
    %vm1097 = vweird.f32 %v268
    %v1098 = vadd.s32 %v1094, 3
    %v1099 = vand.u32 %v1098, 3
    %vm1100 = vcmp.lt.s32.totalorder %v1099, 2
    %vm1101 = vcmp.eq.s32.totalorder %v1099, 0
    %v1102 = vxor.u32 %v1096, 2147483648
    %v1103 = vsel %vm1101, %v1095, %v1102
    %vm1104 = vcmp.eq.s32.totalorder %v1099, 2
    %v1105 = vxor.u32 %v1095, 2147483648
    %v1106 = vsel %vm1104, %v1105, %v1096
    %v1107 = vsel %vm1100, %v1103, %v1106
    %v1108 = vsel %vm1097, nan, %v1107
    %v1109 = vmul.f32 %v243, %v796
    %v1110 = vmul.f32 %v250, %v900
    %v1111 = vmul.f32 %v257, %v1004
    %v1112 = vmul.f32 %v264, %v1108
    %v1113 = vmul.f32 %v1109, 0.1
    %v1114 = vmul.f32 %v1110, 0.1
    %v1115 = vmul.f32 %v1111, 0.1
    %v1116 = vmul.f32 %v1112, 0.1
    %v1117 = vadd.f32 %v1113, 0.0
    %v1118 = vadd.f32 %v1114, 0.0
    %v1119 = vadd.f32 %v1115, 0.0
    %v1120 = vadd.f32 %v1116, 0.0
    %v1121 = vld [vmem:[#allocation4] sm:$0xff]
    %v1122 = vld [vmem:[#allocation4 + $0x8] sm:$0xff]
    %v1123 = vld [vmem:[#allocation4 + $0x10] sm:$0xff]
    %v1124 = vld [vmem:[#allocation4 + $0x18] sm:$0xff]
    %v1125 = vadd.f32 %v1121, %v689
    %v1126 = vadd.f32 %v1122, %v690
    %v1127 = vadd.f32 %v1123, %v691
    %v1128 = vadd.f32 %v1124, %v692
    %1129 = vst [vmem:[#allocation7] sm:$0xff] %v1125
    %1130 = vst [vmem:[#allocation7 + $0x8] sm:$0xff] %v1126
    %1131 = vst [vmem:[#allocation7 + $0x10] sm:$0xff] %v1127
    %1132 = vst [vmem:[#allocation7 + $0x18] sm:$0xff] %v1128
    %v1133 = vld [vmem:[#allocation4 + $0x20] sm:$0xff]
    %v1134 = vld [vmem:[#allocation4 + $0x28] sm:$0xff]
    %v1135 = vld [vmem:[#allocation4 + $0x30] sm:$0xff]
    %v1136 = vld [vmem:[#allocation4 + $0x38] sm:$0xff]
    %v1137 = vadd.f32 %v1133, %v1117
    %v1138 = vadd.f32 %v1134, %v1118
    %v1139 = vadd.f32 %v1135, %v1119
    %v1140 = vadd.f32 %v1136, %v1120
    %1141 = vst [vmem:[#allocation7 + $0x20] sm:$0xff] %v1137
    %1142 = vst [vmem:[#allocation7 + $0x28] sm:$0xff] %v1138
    %1143 = vst [vmem:[#allocation7 + $0x30] sm:$0xff] %v1139
    %1144 = vst [vmem:[#allocation7 + $0x38] sm:$0xff] %v1140
    // Predicated region
    $region10: #{tpu_custom_call.1} parent=1 // pred_check
      _
    $region11: #{tpu_custom_call.1} parent=1 // pred_check_branch
      %1146 = sbr.rel (0) target = $region13
    $region12: #{tpu_custom_call.1} parent=1 // pred_region
      %s1148 = ssub.s32 1024, 1024
      %1149 = vsyncadd [#allocation6], %s1148
      %s1151 = sshll.u32 [#allocation7], 4
      %s1152 = int_to_ptr.vmem [resolvable:$true] %s1151
      %1154 = dma.vmem_to_hbm [thread:$0]  %s1152, 1024, %s2, [#allocation6]
    $region13: #{tpu_custom_call.1} parent=1 // pred_fallthru
      _
    // Predicated region
    $region14: #{tpu_custom_call.1} parent=1 // pred_check
      _
    $region15: #{tpu_custom_call.1} parent=1 // pred_check_branch
      %1156 = sbr.rel (0) target = $region17
    $region16: #{tpu_custom_call.1} parent=1 // pred_region
      %1157 = dma.done [#allocation6], 1024
    $region17: #{tpu_custom_call.1} parent=1 // pred_fallthru
      _
    %1158 = vsyncpa [#allocation5], 1
    %1159 = vsyncpa [#allocation6], 1

</llo_original>
